<compile_context>
chip_gen: v6e
topology: v6e:2x2x1
jax: 0.10.0
libtpu: 0.0.40
codegen_flags: <defaults>
</compile_context>

<pallas_src>
import jax
import jax.numpy as jnp
from jax.experimental import pallas as pl
from jax.experimental.pallas import tpu as pltpu


def _round_up(x: int, m: int) -> int:
    return (x + m - 1) // m * m


def _dense_relu_kernel(x_ref, w_ref, b_ref, o_ref):
    # One grid step == one (row-tile, out-col-tile). MXU matmul accumulates in
    # f32; bias add + ReLU stay on the VPU in f32; single cast at the store.
    y = jnp.dot(x_ref[...], w_ref[...], preferred_element_type=jnp.float32)
    y = y + b_ref[...].astype(jnp.float32)          # (1, tile_n) broadcast over rows
    o_ref[...] = jnp.maximum(y, 0.0).astype(o_ref.dtype)


def _vmem_capacity_bytes() -> int:
    """Physical VMEM per TensorCore (v5e/v6e: 128 MiB, v7x: 64 MiB)."""
    default = 64 * 1024 * 1024  # conservative: smallest current generation (v7x)
    try:
        info = pltpu.get_tpu_info()
        cap = int(getattr(info, "vmem_capacity_bytes", default))
        return cap if cap > 0 else default
    except Exception:
        return default


def _choose_tiles(n: int, d_in: int, d_out_p: int, itemsize: int, budget: int):
    """Pick (tile_m, tile_n, n_steps).

    tile_n:  d_out_p (weights fully resident) unless W would eat more than a
             third of the VMEM budget (relevant on v7x's 64 MiB VMEM), in which
             case the output-feature dim gets its own grid axis in 128-lane
             multiples.
    tile_m:  sized so each grid step moves >= ~2 MiB of HBM traffic, capped by
             VMEM, rounded to clean MXU multiples, and work-gated so v7x's two
             TensorCores each get >= 2 steps when there is enough data.
    """
    w_bytes = d_in * d_out_p * itemsize
    if w_bytes <= budget // 3:
        tile_n = d_out_p
    else:
        tile_n = ((budget // 3) // max(d_in * itemsize, 1)) // 128 * 128
        tile_n = min(max(tile_n, 128), d_out_p)
    n_steps = pl.cdiv(d_out_p, tile_n)

    # Weight/bias VMEM: single-buffered when resident (constant index_map),
    # double-buffered when streamed along the N grid axis.
    w_bufs = 1 if n_steps == 1 else 2
    wb_vmem = w_bufs * (d_in + 1) * tile_n * itemsize

    row_bytes = (d_in + tile_n) * itemsize
    per_row_vmem = 2 * row_bytes                        # double-buffered x + out
    avail = max(budget - wb_vmem, 1 << 20)
    tile_m = min(max(512, (2 << 20) // max(row_bytes, 1)), avail // per_row_vmem)

    if tile_m >= n:
        return n, tile_n, n_steps                       # one full-extent row block

    if tile_m >= 512:
        tile_m = (tile_m // 256) * 256                  # v6e/v7x 256-wide MXU
    elif tile_m >= 128:
        tile_m = (tile_m // 128) * 128                  # v5e 128-wide MXU
    else:
        tile_m = max(8, (tile_m // 8) * 8)              # sublane multiple

    # Work-gated megacore split: only shrink tiles when each step still moves
    # real data (>= ~2 MiB/step after the split); tiny inputs stay one block.
    if n * row_bytes >= (8 << 20) and pl.cdiv(n, tile_m) < 4:
        want = max(256, _round_up(pl.cdiv(n, 4), 256))
        if want < n:
            tile_m = min(tile_m, want)
    return tile_m, tile_n, n_steps


def batched_processing_forward(x, w, b, *, batch_size: int = 64, tile_m=None,
                               compute_dtype=None):
    """Pallas equivalent of BatchedProcessing.forward with inner dense+ReLU.

    `batch_size` is accepted for API parity with the PyTorch module but does
    not affect the result (the inner model is row-wise); the kernel tiling is
    chosen independently for performance. `compute_dtype` (e.g. jnp.bfloat16)
    optionally downcasts x/W before the MXU dot (f32 accumulation kept).
    """
    del batch_size  # result is independent of the module's chunking
    n, d_in = x.shape
    d_out = w.shape[1]
    out_dtype = x.dtype

    if compute_dtype is not None:
        x = x.astype(compute_dtype)
        w = w.astype(compute_dtype)

    # Output-feature padding only when it buys lane-dense stores (d_out >= 128
    # and not a 128-multiple); otherwise write the unpadded output directly.
    if d_out >= 128 and d_out % 128 != 0:
        d_out_p = _round_up(d_out, 128)
        w = jnp.pad(w, ((0, 0), (0, d_out_p - d_out)))
        b = jnp.pad(b, ((0, 0), (0, d_out_p - d_out)))
    else:
        d_out_p = d_out

    itemsize = x.dtype.itemsize
    cap = _vmem_capacity_bytes()
    sizing_budget = max(int(cap * 0.4), 16 * 1024 * 1024)
    vmem_limit = min(max(int(cap * 0.75), sizing_budget + (8 << 20)), cap)

    auto_tm, tile_n, n_steps = _choose_tiles(n, d_in, d_out_p, itemsize, sizing_budget)
    if tile_m is None:
        tile_m = auto_tm
    else:
        tile_m = int(tile_m)
        tile_m = n if tile_m >= n else max(8, (tile_m // 8) * 8)
    m_steps = pl.cdiv(n, tile_m)

    cost = pl.CostEstimate(
        flops=2 * n * d_in * d_out_p,
        transcendentals=0,
        bytes_accessed=int((x.size + w.size + b.size) * itemsize
                           + n * d_out_p * jnp.dtype(out_dtype).itemsize),
    )

    def _run(single_buffer_weights: bool):
        wb_mode = {}
        if single_buffer_weights:
            # Resident blocks (constant index_map): double-buffering them is
            # pure VMEM waste.
            wb_mode = dict(pipeline_mode=pl.Buffered(1))
        grid_spec = pltpu.PrefetchScalarGridSpec(
            num_scalar_prefetch=0,
            grid=(n_steps, m_steps),                    # N outer, M inner
            in_specs=[
                # x row tile: full-extent (unpadded) feature dim; ragged last
                # row tile handled by Pallas edge masking.
                pl.BlockSpec((tile_m, d_in), lambda j, i: (i, 0)),
                # weights / bias: resident (n_steps == 1) or streamed over j.
                pl.BlockSpec((d_in, tile_n), lambda j, i: (0, j), **wb_mode),
                pl.BlockSpec((1, tile_n), lambda j, i: (0, j), **wb_mode),
            ],
            out_specs=pl.BlockSpec((tile_m, tile_n), lambda j, i: (i, j)),
        )
        return pl.pallas_call(
            _dense_relu_kernel,
            out_shape=jax.ShapeDtypeStruct((n, d_out_p), out_dtype),
            grid_spec=grid_spec,
            compiler_params=pltpu.CompilerParams(
                dimension_semantics=("parallel", "parallel"),
                vmem_limit_bytes=vmem_limit,
            ),
            cost_estimate=cost,
        )(x, w, b)

    if n_steps == 1:
        try:
            out_p = _run(single_buffer_weights=True)
        except Exception:
            # Fallback for jax versions where single-buffered pipeline_mode is
            # not supported; identical result, just default double-buffering.
            out_p = _run(single_buffer_weights=False)
    else:
        out_p = _run(single_buffer_weights=False)

    return out_p[:, :d_out] if d_out_p != d_out else out_p


def _reference_forward(x, w, b, batch_size):
    """Pure-JAX replica of BatchedProcessing.forward (explicit batching loop)."""
    def batch_division(n_elems, bs):
        last = 0
        curr = min(bs, n_elems)
        while curr <= n_elems:
            yield (last, curr)
            last = curr
            curr = curr + bs
        if last < n_elems:
            yield (last, n_elems)

    results = []
    for start, end in batch_division(x.shape[0], batch_size):
        chunk = x[start:end]
        r = jnp.maximum(chunk @ w + b[0], 0.0)
        results.append(r)
    return jnp.concatenate(results, axis=0)


if __name__ == "__main__":
    key = jax.random.PRNGKey(0)
    kx, kw, kb = jax.random.split(key, 3)

    # Small shapes consistent with the module: N rows, feature dim 32,
    # module batch_size=8 with a ragged tail (N=20 -> chunks (0,8),(8,16),(16,20)).
    N, D_IN, D_OUT, BATCH = 20, 32, 32, 8

    x = jax.random.normal(kx, (N, D_IN), dtype=jnp.float32)
    w = jax.random.normal(kw, (D_IN, D_OUT), dtype=jnp.float32) * 0.1
    b = jax.random.normal(kb, (1, D_OUT), dtype=jnp.float32) * 0.1

    out = batched_processing_forward(x, w, b, batch_size=BATCH)
    out = jax.block_until_ready(out)
    ref = _reference_forward(x, w, b, BATCH)
    assert out.shape == ref.shape == (N, D_OUT)
    assert jnp.allclose(out, ref, atol=1e-5, rtol=1e-5)

    # Also exercise the multi-row-tile path (ragged last tile, unpadded dims).
    N2 = 300
    x2 = jax.random.normal(kx, (N2, D_IN), dtype=jnp.float32)
    out2 = jax.block_until_ready(
        batched_processing_forward(x2, w, b, batch_size=BATCH, tile_m=128))
    ref2 = _reference_forward(x2, w, b, BATCH)
    assert out2.shape == ref2.shape == (N2, D_OUT)
    assert jnp.allclose(out2, ref2, atol=1e-5, rtol=1e-5)

    print("KERNEL_OK")
</pallas_src>

<mosaic_0001>
module attributes {stable_mosaic.version = 11 : i64} {
  func.func @_dense_relu_kernel(%arg0: i32, %arg1: i32, %arg2: memref<20x32xf32, #tpu.memory_space<vmem>>, %arg3: memref<32x32xf32, #tpu.memory_space<vmem>>, %arg4: memref<1x32xf32, #tpu.memory_space<vmem>>, %arg5: memref<20x32xf32, #tpu.memory_space<vmem>>) attributes {dimension_semantics = [#tpu.dimension_semantics<parallel>, #tpu.dimension_semantics<parallel>], iteration_bounds = array<i64: 1, 1>, scalar_prefetch = 0 : i64, scratch_operands = 0 : i64, tpu.core_type = #tpu.core_type<tc>, window_params = [{transform_indices = @transform_0, window_bounds = array<i64: 20, 32>}, {pipeline_mode = #tpu.pipeline_mode<synchronous>, transform_indices = @transform_1, window_bounds = array<i64: 32, 32>}, {pipeline_mode = #tpu.pipeline_mode<synchronous>, transform_indices = @transform_2, window_bounds = array<i64: 1, 32>}, {transform_indices = @transform_3, window_bounds = array<i64: 20, 32>}]} {
    %c0 = arith.constant 0 : index
    %c0_0 = arith.constant 0 : index
    %0 = vector.load %arg2[%c0, %c0_0] : memref<20x32xf32, #tpu.memory_space<vmem>>, vector<20x32xf32>
    %c0_1 = arith.constant 0 : index
    %c0_2 = arith.constant 0 : index
    %1 = vector.load %arg3[%c0_1, %c0_2] : memref<32x32xf32, #tpu.memory_space<vmem>>, vector<32x32xf32>
    %cst = arith.constant dense<0.000000e+00> : vector<20x32xf32>
    %2 = tpu.matmul %0, %1, %cst {dimension_numbers = #tpu.dot_dimension_numbers<[1], [0], [0], [1], [0, 0, 1, 1], [], []>} : vector<20x32xf32>, vector<32x32xf32>, vector<20x32xf32> -> vector<20x32xf32>
    %c0_3 = arith.constant 0 : index
    %c0_4 = arith.constant 0 : index
    %3 = vector.load %arg4[%c0_3, %c0_4] : memref<1x32xf32, #tpu.memory_space<vmem>>, vector<1x32xf32>
    %4 = vector.broadcast %3 : vector<1x32xf32> to vector<20x32xf32>
    %5 = arith.addf %2, %4 : vector<20x32xf32>
    %cst_5 = arith.constant 0.000000e+00 : f32
    %6 = vector.broadcast %cst_5 : f32 to vector<20x32xf32>
    %7 = arith.maximumf %5, %6 : vector<20x32xf32>
    %c0_6 = arith.constant 0 : index
    %c0_7 = arith.constant 0 : index
    %8 = vector.load %arg5[%c0_6, %c0_7] : memref<20x32xf32, #tpu.memory_space<vmem>>, vector<20x32xf32>
    tpu.vector_store %arg5[%c0_6, %c0_7], %7 {strides = array<i32>} : memref<20x32xf32, #tpu.memory_space<vmem>>, vector<20x32xf32>,
    return
  }
  func.func @transform_0(%arg0: i32, %arg1: i32) -> (i32, i32) {
    %c0_i32 = arith.constant 0 : i32
    %c0_i32_0 = arith.constant 0 : i32
    return %arg1, %c0_i32 : i32, i32
  }
  func.func @transform_1(%arg0: i32, %arg1: i32) -> (i32, i32) {
    %c0_i32 = arith.constant 0 : i32
    %c0_i32_0 = arith.constant 0 : i32
    return %c0_i32, %arg0 : i32, i32
  }
  func.func @transform_2(%arg0: i32, %arg1: i32) -> (i32, i32) {
    %c0_i32 = arith.constant 0 : i32
    %c0_i32_0 = arith.constant 0 : i32
    return %c0_i32, %arg0 : i32, i32
  }
  func.func @transform_3(%arg0: i32, %arg1: i32) -> (i32, i32) {
    %c0_i32 = arith.constant 0 : i32
    return %arg1, %arg0 : i32, i32
  }
}

module attributes {stable_mosaic.version = 11 : i64} {
  func.func @_dense_relu_kernel(%arg0: i32, %arg1: i32, %arg2: memref<20x32xf32, #tpu.memory_space<vmem>>, %arg3: memref<32x32xf32, #tpu.memory_space<vmem>>, %arg4: memref<1x32xf32, #tpu.memory_space<vmem>>, %arg5: memref<20x32xf32, #tpu.memory_space<vmem>>) attributes {dimension_semantics = [#tpu.dimension_semantics<parallel>, #tpu.dimension_semantics<parallel>], iteration_bounds = array<i64: 1, 1>, scalar_prefetch = 0 : i64, scratch_operands = 0 : i64, tpu.core_type = #tpu.core_type<tc>, window_params = [{transform_indices = @transform_0, window_bounds = array<i64: 20, 32>}, {transform_indices = @transform_1, window_bounds = array<i64: 32, 32>}, {transform_indices = @transform_2, window_bounds = array<i64: 1, 32>}, {transform_indices = @transform_3, window_bounds = array<i64: 20, 32>}]} {
    %c0 = arith.constant 0 : index
    %c0_0 = arith.constant 0 : index
    %0 = vector.load %arg2[%c0, %c0_0] : memref<20x32xf32, #tpu.memory_space<vmem>>, vector<20x32xf32>
    %c0_1 = arith.constant 0 : index
    %c0_2 = arith.constant 0 : index
    %1 = vector.load %arg3[%c0_1, %c0_2] : memref<32x32xf32, #tpu.memory_space<vmem>>, vector<32x32xf32>
    %cst = arith.constant dense<0.000000e+00> : vector<20x32xf32>
    %2 = tpu.matmul %0, %1, %cst {dimension_numbers = #tpu.dot_dimension_numbers<[1], [0], [0], [1], [0, 0, 1, 1], [], []>} : vector<20x32xf32>, vector<32x32xf32>, vector<20x32xf32> -> vector<20x32xf32>
    %c0_3 = arith.constant 0 : index
    %c0_4 = arith.constant 0 : index
    %3 = vector.load %arg4[%c0_3, %c0_4] : memref<1x32xf32, #tpu.memory_space<vmem>>, vector<1x32xf32>
    %4 = vector.broadcast %3 : vector<1x32xf32> to vector<20x32xf32>
    %5 = arith.addf %2, %4 : vector<20x32xf32>
    %cst_5 = arith.constant 0.000000e+00 : f32
    %6 = vector.broadcast %cst_5 : f32 to vector<20x32xf32>
    %7 = arith.maximumf %5, %6 : vector<20x32xf32>
    %c0_6 = arith.constant 0 : index
    %c0_7 = arith.constant 0 : index
    %8 = vector.load %arg5[%c0_6, %c0_7] : memref<20x32xf32, #tpu.memory_space<vmem>>, vector<20x32xf32>
    tpu.vector_store %arg5[%c0_6, %c0_7], %7 {strides = array<i32>} : memref<20x32xf32, #tpu.memory_space<vmem>>, vector<20x32xf32>,
    return
  }
  func.func @transform_0(%arg0: i32, %arg1: i32) -> (i32, i32) {
    %c0_i32 = arith.constant 0 : i32
    %c0_i32_0 = arith.constant 0 : i32
    return %arg1, %c0_i32 : i32, i32
  }
  func.func @transform_1(%arg0: i32, %arg1: i32) -> (i32, i32) {
    %c0_i32 = arith.constant 0 : i32
    %c0_i32_0 = arith.constant 0 : i32
    return %c0_i32, %arg0 : i32, i32
  }
  func.func @transform_2(%arg0: i32, %arg1: i32) -> (i32, i32) {
    %c0_i32 = arith.constant 0 : i32
    %c0_i32_0 = arith.constant 0 : i32
    return %c0_i32, %arg0 : i32, i32
  }
  func.func @transform_3(%arg0: i32, %arg1: i32) -> (i32, i32) {
    %c0_i32 = arith.constant 0 : i32
    return %arg1, %arg0 : i32, i32
  }
}

</mosaic_0001>

<llo_original>
// kernel: tpu_custom_call.1
$region0: #{tpu_custom_call.1}
  #allocation0 [shape = 'u32[]', space=smem, size = 0x4, offset = 0x4, fixed_abs, tag = 'smem constant byte address 0x4 - core index']
  #allocation1 [shape = 'u32[144,128]{1,0:T(1,128)}', space=vmem, size = 0x12000, scoped, tag = 'internal scratch']
  %s0 = inlined_call_operand.hbm [shape: f32[20,32], index: 0, kind: input, shape index: {}]
  %s1 = inlined_call_operand.hbm [shape: f32[32,32], index: 1, kind: input, shape index: {}]
  %s2 = inlined_call_operand.vmem [shape: f32[1,32], index: 2, kind: input, shape index: {}]
  %s3 = inlined_call_operand.hbm [shape: f32[20,32], index: 3, kind: output, shape index: {}]
  %s4 = sld [smem:[#allocation0]]
  $region30: #{tpu_custom_call.1} parent=0
    _
  %s6 = ssub.s32 1, %s4
  %s7 = scalar_select 0, %s6, %s4
  $region1: #{tpu_custom_call.1} parent=0
    #allocation2 [shape = 'u8[12288]{0}', space=vmem, size = 0x3000, scoped, tag = 'input window, operand 0, single buffered']
    #allocation3 [shape = 's32[1]{0}', space=sflag, size = 0x4, scoped, tag = 'scoped memory for tpu_custom_call.1']
    #allocation4 [shape = 's32[1]{0}', space=sflag, size = 0x4, scoped, tag = 'scoped memory for tpu_custom_call.1']
    #allocation5 [shape = 'u8[16384]{0}', space=vmem, size = 0x4000, scoped, tag = 'input window, operand 1, single buffered']
    #allocation6 [shape = 's32[1]{0}', space=sflag, size = 0x4, scoped, tag = 'scoped memory for tpu_custom_call.1']
    #allocation7 [shape = 'u8[12288]{0}', space=vmem, size = 0x3000, scoped, tag = 'output window, operand 0, single buffered']
    %8 = vsyncpa [#allocation3], 0
    %9 = vsyncpa [#allocation6], 0
    %10 = vsyncpa [#allocation4], 0
    // Predicated region
    $region2: #{tpu_custom_call.1} parent=1 // pred_check
      _
    $region3: #{tpu_custom_call.1} parent=1 // pred_check_branch
      %12 = sbr.rel (0) target = $region5
    $region4: #{tpu_custom_call.1} parent=1 // pred_region
      %s14 = ssub.s32 384, 384
      %15 = vsyncadd [#allocation3], %s14
      %s16 = sshll.u32 [#allocation2], 4
      %s17 = int_to_ptr.vmem [resolvable:$true] %s16
      %22 = dma.hbm_to_vmem [thread:$0]  %s0, 384, %s17, [#allocation3], 128, 128, 8
    $region5: #{tpu_custom_call.1} parent=1 // pred_fallthru
      _
    // Predicated region
    $region6: #{tpu_custom_call.1} parent=1 // pred_check
      _
    $region7: #{tpu_custom_call.1} parent=1 // pred_check_branch
      %24 = sbr.rel (0) target = $region9
    $region8: #{tpu_custom_call.1} parent=1 // pred_region
      %s26 = ssub.s32 512, 512
      %27 = vsyncadd [#allocation6], %s26
      %s28 = sshll.u32 [#allocation5], 4
      %s29 = int_to_ptr.vmem [resolvable:$true] %s28
      %34 = dma.hbm_to_vmem [thread:$0]  %s1, 512, %s29, [#allocation6], 128, 128, 8
    $region9: #{tpu_custom_call.1} parent=1 // pred_fallthru
      _
    // Predicated region
    $region10: #{tpu_custom_call.1} parent=1 // pred_check
      _
    $region11: #{tpu_custom_call.1} parent=1 // pred_check_branch
      %36 = sbr.rel (0) target = $region13
    $region12: #{tpu_custom_call.1} parent=1 // pred_region
      _
    $region13: #{tpu_custom_call.1} parent=1 // pred_fallthru
      _
    // Predicated region
    $region14: #{tpu_custom_call.1} parent=1 // pred_check
      _
    $region15: #{tpu_custom_call.1} parent=1 // pred_check_branch
      %38 = sbr.rel (0) target = $region17
    $region16: #{tpu_custom_call.1} parent=1 // pred_region
      %39 = dma.done [#allocation3], 384
    $region17: #{tpu_custom_call.1} parent=1 // pred_fallthru
      _
    // Predicated region
    $region18: #{tpu_custom_call.1} parent=1 // pred_check
      _
    $region19: #{tpu_custom_call.1} parent=1 // pred_check_branch
      %41 = sbr.rel (0) target = $region21
    $region20: #{tpu_custom_call.1} parent=1 // pred_region
      %42 = dma.done [#allocation6], 512
    $region21: #{tpu_custom_call.1} parent=1 // pred_fallthru
      _
    %v43 = vld [vmem:[#allocation2] sm:$0xff]
    %v44 = vld [vmem:[#allocation2 + $0x8] sm:$0xff]
    %v45 = vld [vmem:[#allocation2 + $0x10] sm:$0xf]
    %v46 = vld [vmem:[#allocation5] sm:$0xff]
    %v47 = vld [vmem:[#allocation5 + $0x8] sm:$0xff]
    %v48 = vld [vmem:[#allocation5 + $0x10] sm:$0xff]
    %v49 = vld [vmem:[#allocation5 + $0x18] sm:$0xff]
    %v50 = vld [vmem:[%s2] sm:$0x1]
    %v52 = vlaneseq
    %v53 = vshrl.u32 %v52, 7
    %v54 = vsub.s32 0, %v53
    %v55 = vrot.slane %v50, %v54
    %vm57 = vcmask 261120
    %v59 = vsel %vm57, %v43, 0
    %v62 = vsel %vm57, %v44, 0
    %v65 = vsel %vm57, %v45, 0
    %67 = vmatprep.subr.mxu0 0.0
    %68 = vmatpush1.msra.mxu0 0.0
    %69 = vmatprep.subr.mxu0 0.0
    %70 = vmatpush1.msra.mxu0 0.0
    %71 = vmatprep.subr.mxu0 0.0
    %72 = vmatpush1.msra.mxu0 0.0
    %73 = vmatprep.subr.mxu0 0.0
    %74 = vmatpush1.msra.mxu0 0.0
    %75 = vmatprep.subr.mxu0 0.0
    %76 = vmatpush1.msra.mxu0 0.0
    %77 = vmatprep.subr.mxu0 0.0
    %78 = vmatpush1.msra.mxu0 0.0
    %79 = vmatprep.subr.mxu0 0.0
    %80 = vmatpush1.msra.mxu0 0.0
    %81 = vmatprep.subr.mxu0 0.0
    %82 = vmatpush1.msra.mxu0 0.0
    %83 = vmatprep.subr.mxu0 0.0
    %84 = vmatpush1.msra.mxu0 0.0
    %85 = vmatprep.subr.mxu0 0.0
    %86 = vmatpush1.msra.mxu0 0.0
    %87 = vmatprep.subr.mxu0 0.0
    %88 = vmatpush1.msra.mxu0 0.0
    %89 = vmatprep.subr.mxu0 0.0
    %90 = vmatpush1.msra.mxu0 0.0
    %91 = vmatprep.subr.mxu0 0.0
    %92 = vmatpush1.msra.mxu0 %v49
    %93 = vmatprep.subr.mxu0 0.0
    %94 = vmatpush1.msra.mxu0 %v48
    %95 = vmatprep.subr.mxu0 0.0
    %96 = vmatpush1.msra.mxu0 %v47
    %97 = vmatprep.subr.mxu0 0.0
    %98 = vmatpush1.msra.mxu0 %v46
    %99 = vmatprep.subr.mxu0 0.0
    %100 = vmatpush2.msra.mxu0 0.0
    %101 = vmatprep.subr.mxu0 0.0
    %102 = vmatpush2.msra.mxu0 0.0
    %103 = vmatprep.subr.mxu0 0.0
    %104 = vmatpush2.msra.mxu0 0.0
    %105 = vmatprep.subr.mxu0 0.0
    %106 = vmatpush2.msra.mxu0 0.0
    %107 = vmatprep.subr.mxu0 0.0
    %108 = vmatpush2.msra.mxu0 0.0
    %109 = vmatprep.subr.mxu0 0.0
    %110 = vmatpush2.msra.mxu0 0.0
    %111 = vmatprep.subr.mxu0 0.0
    %112 = vmatpush2.msra.mxu0 0.0
    %113 = vmatprep.subr.mxu0 0.0
    %114 = vmatpush2.msra.mxu0 0.0
    %115 = vmatprep.subr.mxu0 0.0
    %116 = vmatpush2.msra.mxu0 0.0
    %117 = vmatprep.subr.mxu0 0.0
    %118 = vmatpush2.msra.mxu0 0.0
    %119 = vmatprep.subr.mxu0 0.0
    %120 = vmatpush2.msra.mxu0 0.0
    %121 = vmatprep.subr.mxu0 0.0
    %122 = vmatpush2.msra.mxu0 0.0
    %123 = vmatprep.subr.mxu0 0.0
    %124 = vmatpush2.msra.mxu0 0.0
    %125 = vmatprep.subr.mxu0 0.0
    %126 = vmatpush2.msra.mxu0 0.0
    %127 = vmatprep.subr.mxu0 0.0
    %128 = vmatpush2.msra.mxu0 0.0
    %129 = vmatprep.subr.mxu0 0.0
    %130 = vmatpush2.msra.mxu0 0.0
    %131 = vmatprep.mubr.f32.mxu0 0.0
    %132 = vmatmul.mubr.f32.gmra.mxu0 %v59
    %v133 = vpop.f32.mrf.mxu0
    %v134 = vadd.f32 %v55, %v133
    %v135 = vpop.f32.mrf.mxu0
    %136 = vmatprep.mubr.f32.mxu0 0.0
    %137 = vmatmul.mubr.f32.gmra.mxu0 %v62
    %v138 = vpop.f32.mrf.mxu0
    %v139 = vadd.f32 %v55, %v138
    %v140 = vpop.f32.mrf.mxu0
    %141 = vmatprep.mubr.f32.mxu0 0.0
    %142 = vmatmul.mubr.f32.gmra.mxu0 %v65
    %v143 = vpop.f32.mrf.mxu0
    %v144 = vadd.f32 %v55, %v143
    %v145 = vpop.f32.mrf.mxu0
    %146 = vdwg.mxu0
    %v147 = vmax.f32 %v134, 0.0
    %v148 = vmax.f32 %v139, 0.0
    %v149 = vmax.f32 %v144, 0.0
    %150 = vst.msk [vmem:[#allocation7] sm:$0xff] %vm57, %v147
    %151 = vst.msk [vmem:[#allocation7 + $0x8] sm:$0xff] %vm57, %v148
    %vm152 = vcmask 257024
    %153 = vst.msk [vmem:[#allocation7 + $0x10] sm:$0xf] %vm152, %v149
    // Predicated region
    $region22: #{tpu_custom_call.1} parent=1 // pred_check
      _
    $region23: #{tpu_custom_call.1} parent=1 // pred_check_branch
      %155 = sbr.rel (0) target = $region25
    $region24: #{tpu_custom_call.1} parent=1 // pred_region
      %s157 = ssub.s32 384, 384
      %158 = vsyncadd [#allocation4], %s157
      %s159 = sshll.u32 [#allocation7], 4
      %s160 = int_to_ptr.vmem [resolvable:$true] %s159
      %165 = dma.vmem_to_hbm [thread:$0]  %s160, 384, %s3, [#allocation4], 128, 128, 8
    $region25: #{tpu_custom_call.1} parent=1 // pred_fallthru
      _
    // Predicated region
    $region26: #{tpu_custom_call.1} parent=1 // pred_check
      _
    $region27: #{tpu_custom_call.1} parent=1 // pred_check_branch
      %167 = sbr.rel (0) target = $region29
    $region28: #{tpu_custom_call.1} parent=1 // pred_region
      %168 = dma.done [#allocation4], 384
    $region29: #{tpu_custom_call.1} parent=1 // pred_fallthru
      _
    %169 = vsyncpa [#allocation3], 1
    %170 = vsyncpa [#allocation6], 1
    %171 = vsyncpa [#allocation4], 1

// kernel: tpu_custom_call.1
$region0: #{tpu_custom_call.1}
  #allocation0 [shape = 'u32[]', space=smem, size = 0x4, offset = 0x4, fixed_abs, tag = 'smem constant byte address 0x4 - core index']
  #allocation1 [shape = 'u32[144,128]{1,0:T(1,128)}', space=vmem, size = 0x12000, scoped, tag = 'internal scratch']
  %s0 = inlined_call_operand.hbm [shape: f32[20,32], index: 0, kind: input, shape index: {}]
  %s1 = inlined_call_operand.hbm [shape: f32[32,32], index: 1, kind: input, shape index: {}]
  %s2 = inlined_call_operand.vmem [shape: f32[1,32], index: 2, kind: input, shape index: {}]
  %s3 = inlined_call_operand.hbm [shape: f32[20,32], index: 3, kind: output, shape index: {}]
  %s4 = sld [smem:[#allocation0]]
  $region30: #{tpu_custom_call.1} parent=0
    _
  %s6 = ssub.s32 1, %s4
  %s7 = scalar_select 0, %s6, %s4
  $region1: #{tpu_custom_call.1} parent=0
    #allocation2 [shape = 'u8[12288]{0}', space=vmem, size = 0x3000, scoped, tag = 'input window, operand 0, single buffered']
    #allocation3 [shape = 's32[1]{0}', space=sflag, size = 0x4, scoped, tag = 'scoped memory for tpu_custom_call.1']
    #allocation4 [shape = 's32[1]{0}', space=sflag, size = 0x4, scoped, tag = 'scoped memory for tpu_custom_call.1']
    #allocation5 [shape = 'u8[16384]{0}', space=vmem, size = 0x4000, scoped, tag = 'input window, operand 1, single buffered']
    #allocation6 [shape = 's32[1]{0}', space=sflag, size = 0x4, scoped, tag = 'scoped memory for tpu_custom_call.1']
    #allocation7 [shape = 'u8[12288]{0}', space=vmem, size = 0x3000, scoped, tag = 'output window, operand 0, single buffered']
    %8 = vsyncpa [#allocation3], 0
    %9 = vsyncpa [#allocation6], 0
    %10 = vsyncpa [#allocation4], 0
    // Predicated region
    $region2: #{tpu_custom_call.1} parent=1 // pred_check
      _
    $region3: #{tpu_custom_call.1} parent=1 // pred_check_branch
      %12 = sbr.rel (0) target = $region5
    $region4: #{tpu_custom_call.1} parent=1 // pred_region
      %s14 = ssub.s32 384, 384
      %15 = vsyncadd [#allocation3], %s14
      %s16 = sshll.u32 [#allocation2], 4
      %s17 = int_to_ptr.vmem [resolvable:$true] %s16
      %22 = dma.hbm_to_vmem [thread:$0]  %s0, 384, %s17, [#allocation3], 128, 128, 8
    $region5: #{tpu_custom_call.1} parent=1 // pred_fallthru
      _
    // Predicated region
    $region6: #{tpu_custom_call.1} parent=1 // pred_check
      _
    $region7: #{tpu_custom_call.1} parent=1 // pred_check_branch
      %24 = sbr.rel (0) target = $region9
    $region8: #{tpu_custom_call.1} parent=1 // pred_region
      %s26 = ssub.s32 512, 512
      %27 = vsyncadd [#allocation6], %s26
      %s28 = sshll.u32 [#allocation5], 4
      %s29 = int_to_ptr.vmem [resolvable:$true] %s28
      %34 = dma.hbm_to_vmem [thread:$0]  %s1, 512, %s29, [#allocation6], 128, 128, 8
    $region9: #{tpu_custom_call.1} parent=1 // pred_fallthru
      _
    // Predicated region
    $region10: #{tpu_custom_call.1} parent=1 // pred_check
      _
    $region11: #{tpu_custom_call.1} parent=1 // pred_check_branch
      %36 = sbr.rel (0) target = $region13
    $region12: #{tpu_custom_call.1} parent=1 // pred_region
      _
    $region13: #{tpu_custom_call.1} parent=1 // pred_fallthru
      _
    // Predicated region
    $region14: #{tpu_custom_call.1} parent=1 // pred_check
      _
    $region15: #{tpu_custom_call.1} parent=1 // pred_check_branch
      %38 = sbr.rel (0) target = $region17
    $region16: #{tpu_custom_call.1} parent=1 // pred_region
      %39 = dma.done [#allocation3], 384
    $region17: #{tpu_custom_call.1} parent=1 // pred_fallthru
      _
    // Predicated region
    $region18: #{tpu_custom_call.1} parent=1 // pred_check
      _
    $region19: #{tpu_custom_call.1} parent=1 // pred_check_branch
      %41 = sbr.rel (0) target = $region21
    $region20: #{tpu_custom_call.1} parent=1 // pred_region
      %42 = dma.done [#allocation6], 512
    $region21: #{tpu_custom_call.1} parent=1 // pred_fallthru
      _
    %v43 = vld [vmem:[#allocation2] sm:$0xff]
    %v44 = vld [vmem:[#allocation2 + $0x8] sm:$0xff]
    %v45 = vld [vmem:[#allocation2 + $0x10] sm:$0xf]
    %v46 = vld [vmem:[#allocation5] sm:$0xff]
    %v47 = vld [vmem:[#allocation5 + $0x8] sm:$0xff]
    %v48 = vld [vmem:[#allocation5 + $0x10] sm:$0xff]
    %v49 = vld [vmem:[#allocation5 + $0x18] sm:$0xff]
    %v50 = vld [vmem:[%s2] sm:$0x1]
    %v52 = vlaneseq
    %v53 = vshrl.u32 %v52, 7
    %v54 = vsub.s32 0, %v53
    %v55 = vrot.slane %v50, %v54
    %vm57 = vcmask 261120
    %v59 = vsel %vm57, %v43, 0
    %v62 = vsel %vm57, %v44, 0
    %v65 = vsel %vm57, %v45, 0
    %67 = vmatprep.subr.mxu0 0.0
    %68 = vmatpush1.msra.mxu0 0.0
    %69 = vmatprep.subr.mxu0 0.0
    %70 = vmatpush1.msra.mxu0 0.0
    %71 = vmatprep.subr.mxu0 0.0
    %72 = vmatpush1.msra.mxu0 0.0
    %73 = vmatprep.subr.mxu0 0.0
    %74 = vmatpush1.msra.mxu0 0.0
    %75 = vmatprep.subr.mxu0 0.0
    %76 = vmatpush1.msra.mxu0 0.0
    %77 = vmatprep.subr.mxu0 0.0
    %78 = vmatpush1.msra.mxu0 0.0
    %79 = vmatprep.subr.mxu0 0.0
    %80 = vmatpush1.msra.mxu0 0.0
    %81 = vmatprep.subr.mxu0 0.0
    %82 = vmatpush1.msra.mxu0 0.0
    %83 = vmatprep.subr.mxu0 0.0
    %84 = vmatpush1.msra.mxu0 0.0
    %85 = vmatprep.subr.mxu0 0.0
    %86 = vmatpush1.msra.mxu0 0.0
    %87 = vmatprep.subr.mxu0 0.0
    %88 = vmatpush1.msra.mxu0 0.0
    %89 = vmatprep.subr.mxu0 0.0
    %90 = vmatpush1.msra.mxu0 0.0
    %91 = vmatprep.subr.mxu0 0.0
    %92 = vmatpush1.msra.mxu0 %v49
    %93 = vmatprep.subr.mxu0 0.0
    %94 = vmatpush1.msra.mxu0 %v48
    %95 = vmatprep.subr.mxu0 0.0
    %96 = vmatpush1.msra.mxu0 %v47
    %97 = vmatprep.subr.mxu0 0.0
    %98 = vmatpush1.msra.mxu0 %v46
    %99 = vmatprep.subr.mxu0 0.0
    %100 = vmatpush2.msra.mxu0 0.0
    %101 = vmatprep.subr.mxu0 0.0
    %102 = vmatpush2.msra.mxu0 0.0
    %103 = vmatprep.subr.mxu0 0.0
    %104 = vmatpush2.msra.mxu0 0.0
    %105 = vmatprep.subr.mxu0 0.0
    %106 = vmatpush2.msra.mxu0 0.0
    %107 = vmatprep.subr.mxu0 0.0
    %108 = vmatpush2.msra.mxu0 0.0
    %109 = vmatprep.subr.mxu0 0.0
    %110 = vmatpush2.msra.mxu0 0.0
    %111 = vmatprep.subr.mxu0 0.0
    %112 = vmatpush2.msra.mxu0 0.0
    %113 = vmatprep.subr.mxu0 0.0
    %114 = vmatpush2.msra.mxu0 0.0
    %115 = vmatprep.subr.mxu0 0.0
    %116 = vmatpush2.msra.mxu0 0.0
    %117 = vmatprep.subr.mxu0 0.0
    %118 = vmatpush2.msra.mxu0 0.0
    %119 = vmatprep.subr.mxu0 0.0
    %120 = vmatpush2.msra.mxu0 0.0
    %121 = vmatprep.subr.mxu0 0.0
    %122 = vmatpush2.msra.mxu0 0.0
    %123 = vmatprep.subr.mxu0 0.0
    %124 = vmatpush2.msra.mxu0 0.0
    %125 = vmatprep.subr.mxu0 0.0
    %126 = vmatpush2.msra.mxu0 0.0
    %127 = vmatprep.subr.mxu0 0.0
    %128 = vmatpush2.msra.mxu0 0.0
    %129 = vmatprep.subr.mxu0 0.0
    %130 = vmatpush2.msra.mxu0 0.0
    %131 = vmatprep.mubr.f32.mxu0 0.0
    %132 = vmatmul.mubr.f32.gmra.mxu0 %v59
    %v133 = vpop.f32.mrf.mxu0
    %v134 = vadd.f32 %v55, %v133
    %v135 = vpop.f32.mrf.mxu0
    %136 = vmatprep.mubr.f32.mxu0 0.0
    %137 = vmatmul.mubr.f32.gmra.mxu0 %v62
    %v138 = vpop.f32.mrf.mxu0
    %v139 = vadd.f32 %v55, %v138
    %v140 = vpop.f32.mrf.mxu0
    %141 = vmatprep.mubr.f32.mxu0 0.0
    %142 = vmatmul.mubr.f32.gmra.mxu0 %v65
    %v143 = vpop.f32.mrf.mxu0
    %v144 = vadd.f32 %v55, %v143
    %v145 = vpop.f32.mrf.mxu0
    %146 = vdwg.mxu0
    %v147 = vmax.f32 %v134, 0.0
    %v148 = vmax.f32 %v139, 0.0
    %v149 = vmax.f32 %v144, 0.0
    %150 = vst.msk [vmem:[#allocation7] sm:$0xff] %vm57, %v147
    %151 = vst.msk [vmem:[#allocation7 + $0x8] sm:$0xff] %vm57, %v148
    %vm152 = vcmask 257024
    %153 = vst.msk [vmem:[#allocation7 + $0x10] sm:$0xf] %vm152, %v149
    // Predicated region
    $region22: #{tpu_custom_call.1} parent=1 // pred_check
      _
    $region23: #{tpu_custom_call.1} parent=1 // pred_check_branch
      %155 = sbr.rel (0) target = $region25
    $region24: #{tpu_custom_call.1} parent=1 // pred_region
      %s157 = ssub.s32 384, 384
      %158 = vsyncadd [#allocation4], %s157
      %s159 = sshll.u32 [#allocation7], 4
      %s160 = int_to_ptr.vmem [resolvable:$true] %s159
      %165 = dma.vmem_to_hbm [thread:$0]  %s160, 384, %s3, [#allocation4], 128, 128, 8
    $region25: #{tpu_custom_call.1} parent=1 // pred_fallthru
      _
    // Predicated region
    $region26: #{tpu_custom_call.1} parent=1 // pred_check
      _
    $region27: #{tpu_custom_call.1} parent=1 // pred_check_branch
      %167 = sbr.rel (0) target = $region29
    $region28: #{tpu_custom_call.1} parent=1 // pred_region
      %168 = dma.done [#allocation4], 384
    $region29: #{tpu_custom_call.1} parent=1 // pred_fallthru
      _
    %169 = vsyncpa [#allocation3], 1
    %170 = vsyncpa [#allocation6], 1
    %171 = vsyncpa [#allocation4], 1

</llo_original>
